<compile_context>
chip_gen: v7x
topology: tpu7x:2x2x1
jax: 0.10.0
libtpu: 0.0.40
codegen_flags: <defaults>
</compile_context>

<pallas_src>
import jax
import jax.numpy as jnp
from jax.experimental import pallas as pl
from jax.experimental.pallas import tpu as pltpu


_LANES = 128
# Per-tile byte budget. Double-buffered input + output ~= 4x tile bytes
# resident, so 3 MiB tiles keep us at ~12 MiB scoped VMEM — safe on every
# generation (v5e 16 MiB default, v6e 32 MiB, v7x 32 MiB of 64 MiB physical)
# while sitting in the 2-4 MiB sweet spot (~85% of HBM roofline measured).
_TILE_BYTES_CAP = 3 * 1024 * 1024
# Below this total size a single grid step (one DMA descriptor) wins.
_SMALL_INPUT_BYTES = 1 * 1024 * 1024


def _pow4_kernel(x_ref, o_ref):
    # pred**4 + 0.1 computed as (x*x)*(x*x) + 0.1 — pure VPU elementwise work.
    x = x_ref[...]
    x2 = x * x
    o_ref[...] = x2 * x2 + jnp.asarray(0.1, dtype=x.dtype)


def _sublane_quantum(dtype):
    """Rows per native tile: 8 for 4-byte, 16 for 2-byte, 32 for 1-byte dtypes."""
    itemsize = jnp.dtype(dtype).itemsize
    return max(8, 32 // max(1, itemsize))


def _pick_tile_rows(rows, itemsize, quantum):
    """Row tile: VMEM-capped, quantum-aligned, >=2 grid steps for big inputs."""
    total_bytes = rows * _LANES * itemsize
    if total_bytes <= _SMALL_INPUT_BYTES:
        # Small input: single grid step — one DMA, no per-step overhead.
        # (rows is already a multiple of `quantum` thanks to wrapper padding.)
        return rows
    # Largest quantum-aligned tile under the byte cap.
    cap_rows = (_TILE_BYTES_CAP // (_LANES * itemsize)) // quantum * quantum
    cap_rows = max(cap_rows, quantum)
    # Force >= 2 grid steps so v7x's two TensorCores both get work and the
    # pipeline can overlap DMA-in / compute / DMA-out on all generations.
    half_rows = pl.cdiv(pl.cdiv(rows, 2), quantum) * quantum
    return max(quantum, min(cap_rows, half_rows))


def _pallas_pow4_plus_c(x2d, quantum):
    rows, cols = x2d.shape
    tile_rows = _pick_tile_rows(rows, x2d.dtype.itemsize, quantum)
    grid = (pl.cdiv(rows, tile_rows),)  # ragged last block handled by Pallas
    return pl.pallas_call(
        _pow4_kernel,
        out_shape=jax.ShapeDtypeStruct((rows, cols), x2d.dtype),
        grid_spec=pl.GridSpec(
            grid=grid,
            in_specs=[pl.BlockSpec((tile_rows, cols), lambda i: (i, 0))],
            out_specs=pl.BlockSpec((tile_rows, cols), lambda i: (i, 0)),
        ),
        compiler_params=pltpu.CompilerParams(
            dimension_semantics=("parallel",),
        ),
    )(x2d)


def loss2_forward(pred, true=None):
    """JAX/Pallas equivalent of Loss2.forward: pred ** 4 + 0.1.

    `true` is accepted for signature parity but unused (as in the reference).
    """
    del true
    orig_shape = pred.shape
    n = pred.size
    if n == 0:
        return jnp.asarray(pred, dtype=jnp.result_type(pred.dtype, jnp.float32)
                           if not jnp.issubdtype(pred.dtype, jnp.floating)
                           else pred.dtype).reshape(orig_shape)

    x = pred
    # Match PyTorch promotion: integer pred ** 4 + 0.1 -> float.
    if not jnp.issubdtype(x.dtype, jnp.floating):
        x = x.astype(jnp.float32)

    quantum = _sublane_quantum(x.dtype)
    chunk = quantum * _LANES  # elements in one native (quantum, 128) tile

    # Flatten and zero-pad so the 2D view is lane-dense (last dim == 128) and
    # the row count is a multiple of the dtype's sublane quantum. Padded
    # elements compute 0**4 + 0.1 and are sliced off afterwards.
    flat = jnp.reshape(x, (n,))
    pad = (-n) % chunk
    if pad:
        flat = jnp.pad(flat, (0, pad))
    rows = flat.size // _LANES
    x2d = jnp.reshape(flat, (rows, _LANES))

    y2d = _pallas_pow4_plus_c(x2d, quantum)
    y = jnp.reshape(y2d, (-1,))[:n]
    return jnp.reshape(y, orig_shape)


if __name__ == "__main__":
    key = jax.random.PRNGKey(0)
    k1, k2 = jax.random.split(key)
    pred = jax.random.normal(k1, (2, 4, 16, 16), dtype=jnp.float32)
    true = jax.random.normal(k2, (2, 4, 16, 16), dtype=jnp.float32)

    y = loss2_forward(pred, true)
    y = jax.block_until_ready(y)

    ref = pred ** 4 + 0.1
    assert y.shape == ref.shape, (y.shape, ref.shape)
    assert y.dtype == ref.dtype, (y.dtype, ref.dtype)
    assert jnp.allclose(y, ref, rtol=1e-6, atol=1e-6), "mismatch vs reference"

    print("KERNEL_OK")
</pallas_src>

<mosaic_0001>
module attributes {stable_mosaic.version = 11 : i64} {
  func.func @_pow4_kernel(%arg0: i32, %arg1: memref<16x128xf32, #tpu.memory_space<vmem>>, %arg2: memref<16x128xf32, #tpu.memory_space<vmem>>) attributes {dimension_semantics = [#tpu.dimension_semantics<parallel>], iteration_bounds = array<i64: 1>, scalar_prefetch = 0 : i64, scratch_operands = 0 : i64, tpu.core_type = #tpu.core_type<tc>, window_params = [{transform_indices = @transform_0, window_bounds = array<i64: 16, 128>}, {transform_indices = @transform_1, window_bounds = array<i64: 16, 128>}]} {
    %c0 = arith.constant 0 : index
    %c0_0 = arith.constant 0 : index
    %0 = vector.load %arg1[%c0, %c0_0] : memref<16x128xf32, #tpu.memory_space<vmem>>, vector<16x128xf32>
    %1 = arith.mulf %0, %0 : vector<16x128xf32>
    %2 = arith.mulf %1, %1 : vector<16x128xf32>
    %cst = arith.constant 1.000000e-01 : f32
    %3 = vector.broadcast %cst : f32 to vector<16x128xf32>
    %4 = arith.addf %2, %3 : vector<16x128xf32>
    %c0_1 = arith.constant 0 : index
    %c0_2 = arith.constant 0 : index
    %5 = vector.load %arg2[%c0_1, %c0_2] : memref<16x128xf32, #tpu.memory_space<vmem>>, vector<16x128xf32>
    tpu.vector_store %arg2[%c0_1, %c0_2], %4 {strides = array<i32>} : memref<16x128xf32, #tpu.memory_space<vmem>>, vector<16x128xf32>,
    return
  }
  func.func @transform_0(%arg0: i32) -> (i32, i32) {
    %c0_i32 = arith.constant 0 : i32
    %c0_i32_0 = arith.constant 0 : i32
    return %arg0, %c0_i32 : i32, i32
  }
  func.func @transform_1(%arg0: i32) -> (i32, i32) {
    %c0_i32 = arith.constant 0 : i32
    %c0_i32_0 = arith.constant 0 : i32
    return %arg0, %c0_i32 : i32, i32
  }
}

</mosaic_0001>

<llo_original>
// kernel: tpu_custom_call.1
$region0: #{tpu_custom_call.1}
  #allocation0 [shape = 'u32[]', space=smem, size = 0x4, offset = 0x4, fixed_abs, tag = 'smem constant byte address 0x4 - core index']
  #allocation1 [shape = 'u32[144,128]{1,0:T(1,128)}', space=vmem, size = 0x12000, scoped, tag = 'internal scratch']
  %s0 = inlined_call_operand.hbm [shape: f32[16,128], index: 0, kind: input, shape index: {}]
  %s1 = inlined_call_operand.hbm [shape: f32[16,128], index: 1, kind: output, shape index: {}]
  %s2 = sld [smem:[#allocation0]]
  $region18: #{tpu_custom_call.1} parent=0
    _
  %s4 = ssub.s32 1, %s2
  %s5 = scalar_select 0, %s4, %s2
  $region1: #{tpu_custom_call.1} parent=0
    #allocation2 [shape = 'u8[8192]{0}', space=vmem, size = 0x2000, scoped, tag = 'input window, operand 0, single buffered']
    #allocation3 [shape = 's32[1]{0}', space=sflag, size = 0x4, scoped, tag = 'scoped memory for tpu_custom_call.1']
    #allocation4 [shape = 's32[1]{0}', space=sflag, size = 0x4, scoped, tag = 'scoped memory for tpu_custom_call.1']
    #allocation5 [shape = 'u8[8192]{0}', space=vmem, size = 0x2000, scoped, tag = 'output window, operand 0, single buffered']
    %6 = vsyncpa [#allocation3], 0
    %7 = vsyncpa [#allocation4], 0
    // Predicated region
    $region2: #{tpu_custom_call.1} parent=1 // pred_check
      _
    $region3: #{tpu_custom_call.1} parent=1 // pred_check_branch
      %9 = sbr.rel (0) target = $region5
    $region4: #{tpu_custom_call.1} parent=1 // pred_region
      %s11 = ssub.s32 256, 256
      %12 = vsyncadd [#allocation3], %s11
      %s13 = sshll.u32 [#allocation2], 4
      %s14 = int_to_ptr.vmem [resolvable:$true] %s13
      %19 = dma.hbm_to_vmem [thread:$0]  %s0, 256, %s14, [#allocation3], 128, 128, 8
    $region5: #{tpu_custom_call.1} parent=1 // pred_fallthru
      _
    // Predicated region
    $region6: #{tpu_custom_call.1} parent=1 // pred_check
      _
    $region7: #{tpu_custom_call.1} parent=1 // pred_check_branch
      %21 = sbr.rel (0) target = $region9
    $region8: #{tpu_custom_call.1} parent=1 // pred_region
      %22 = dma.done [#allocation3], 256
    $region9: #{tpu_custom_call.1} parent=1 // pred_fallthru
      _
    %v23 = vld [vmem:[#allocation2] sm:$0xff]
    %v24 = vld [vmem:[#allocation2 + $0x8] sm:$0xff]
    %v25 = vmul.f32 %v23, %v23
    %v26 = vmul.f32 %v24, %v24
    %v27 = vmul.f32 %v25, %v25
    %v28 = vmul.f32 %v26, %v26
    %v29 = vadd.f32 %v27, 0.1
    %v30 = vadd.f32 %v28, 0.1
    %31 = vst [vmem:[#allocation5] sm:$0xff] %v29
    %32 = vst [vmem:[#allocation5 + $0x8] sm:$0xff] %v30
    // Predicated region
    $region10: #{tpu_custom_call.1} parent=1 // pred_check
      _
    $region11: #{tpu_custom_call.1} parent=1 // pred_check_branch
      %34 = sbr.rel (0) target = $region13
    $region12: #{tpu_custom_call.1} parent=1 // pred_region
      %s36 = ssub.s32 256, 256
      %37 = vsyncadd [#allocation4], %s36
      %s38 = sshll.u32 [#allocation5], 4
      %s39 = int_to_ptr.vmem [resolvable:$true] %s38
      %44 = dma.vmem_to_hbm [thread:$0]  %s39, 256, %s1, [#allocation4], 128, 128, 8
    $region13: #{tpu_custom_call.1} parent=1 // pred_fallthru
      _
    // Predicated region
    $region14: #{tpu_custom_call.1} parent=1 // pred_check
      _
    $region15: #{tpu_custom_call.1} parent=1 // pred_check_branch
      %46 = sbr.rel (0) target = $region17
    $region16: #{tpu_custom_call.1} parent=1 // pred_region
      %47 = dma.done [#allocation4], 256
    $region17: #{tpu_custom_call.1} parent=1 // pred_fallthru
      _
    %48 = vsyncpa [#allocation3], 1
    %49 = vsyncpa [#allocation4], 1

</llo_original>
